<compile_context>
chip_gen: v5e
topology: v5e:2x2
jax: 0.10.0
libtpu: 0.0.40
codegen_flags: <defaults>
</compile_context>

<pallas_src>
import functools

import jax
import jax.numpy as jnp
from jax.experimental import pallas as pl
from jax.experimental.pallas import tpu as pltpu

HIDDEN = 128  # fixed by the module (fc1 = Linear(*input_dims, 128))


def _round_up(x, m):
    return ((x + m - 1) // m) * m


def _mlp_kernel(rows1, hidden, x_ref, p_ref, out_ref):
    """Fused fc1 -> ReLU -> fc2 on one batch block.

    x_ref  : (block_b, rows1)  state padded with a ones-column (bias) at col d_in
    p_ref  : (rows1 + hidden + 8, lanes) packed params:
               rows [0:rows1]            -> w1 rows (row d_in = b1, rest zero)
               rows [rows1:rows1+hidden] -> w2 zero-padded to `lanes` columns
               row  [rows1+hidden]       -> b2 zero-padded to `lanes` columns
    out_ref: (block_b, lanes) lane-dense padded logits (cols >= n_actions are exactly zero)
    """
    x = x_ref[...]
    w1 = p_ref[0:rows1, :]                               # (rows1, lanes)  static, aligned slice
    w2 = p_ref[rows1:rows1 + hidden, :]                  # (hidden, lanes) static, aligned slice
    b2 = p_ref[rows1 + hidden:rows1 + hidden + 1, :]     # (1, lanes)

    # fc1 + bias fused into one MXU matmul (bias row hit by the ones-column of x), f32 accumulation.
    h = jnp.dot(x, w1, preferred_element_type=jnp.float32)   # (block_b, lanes==hidden)
    h = jnp.maximum(h, 0.0)                                  # ReLU on the VPU
    # fc2, f32 accumulation; cast activations back to param dtype (no-op for f32, bf16 for bf16 slab).
    o = jnp.dot(h.astype(w2.dtype), w2, preferred_element_type=jnp.float32) + b2
    out_ref[...] = o.astype(out_ref.dtype)


def pack_params(w1, b1, w2, b2, dtype=jnp.float32):
    """Pack (w1, b1, w2, b2) into one lane-dense slab. Weights are (in_features, out_features).

    Layout (all rows are `lanes` = 128 wide):
      [0 : rows1]              w1 rows, with row d_in = b1  (rows1 = round_up(d_in + 1, 8))
      [rows1 : rows1 + 128]    w2, columns >= n_actions are exactly zero
      [rows1 + 128]            b2, columns >= n_actions are exactly zero
      remaining rows           zero padding to a sublane multiple
    """
    d_in, hidden = w1.shape
    n_actions = w2.shape[1]
    assert hidden == HIDDEN and w2.shape[0] == HIDDEN
    rows1 = _round_up(d_in + 1, 8)
    lanes = _round_up(max(hidden, n_actions), 128)

    w1_blk = jnp.zeros((rows1, lanes), dtype)
    w1_blk = w1_blk.at[:d_in, :hidden].set(w1.astype(dtype))
    w1_blk = w1_blk.at[d_in, :hidden].set(b1.reshape(-1).astype(dtype))

    w2_blk = jnp.zeros((hidden, lanes), dtype)
    w2_blk = w2_blk.at[:, :n_actions].set(w2.astype(dtype))

    b2_blk = jnp.zeros((8, lanes), dtype)
    b2_blk = b2_blk.at[0, :n_actions].set(b2.reshape(-1).astype(dtype))

    return jnp.concatenate([w1_blk, w2_blk, b2_blk], axis=0)  # (rows1 + 128 + 8, lanes)


@functools.partial(jax.jit, static_argnames=("n_actions",))
def linear_dqn_forward(state, slab, *, n_actions):
    """state: (B, d_in) f32; slab: packed params from pack_params(). Returns (B, n_actions) f32."""
    B, d_in = state.shape
    rows1 = _round_up(d_in + 1, 8)
    total_rows, lanes = slab.shape
    hidden = total_rows - rows1 - 8

    # Batch tiling: up to 1024 rows per block (fewer grid steps -> less per-step overhead);
    # weights stay VMEM-resident across grid steps.
    block_b = min(1024, _round_up(B, 8))
    n_blocks = pl.cdiv(B, block_b)
    b_pad = n_blocks * block_b

    # Build padded state (b_pad, rows1) in one concat + pad: [state | ones | zeros].
    # The ones-column at col d_in folds the fc1 bias into the first MXU matmul.
    xdt = slab.dtype
    x = jnp.concatenate(
        [state.astype(xdt),
         jnp.ones((B, 1), xdt),
         jnp.zeros((B, rows1 - d_in - 1), xdt)],
        axis=1)
    x = jnp.pad(x, ((0, b_pad - B), (0, 0)))

    flops = 2 * b_pad * lanes * (rows1 + hidden)
    bytes_accessed = (x.size * x.dtype.itemsize
                      + slab.size * slab.dtype.itemsize
                      + b_pad * lanes * 4)

    out_padded = pl.pallas_call(
        functools.partial(_mlp_kernel, rows1, hidden),
        out_shape=jax.ShapeDtypeStruct((b_pad, lanes), jnp.float32),
        grid_spec=pltpu.PrefetchScalarGridSpec(
            num_scalar_prefetch=0,
            grid=(n_blocks,),
            in_specs=[
                pl.BlockSpec((block_b, rows1), lambda i: (i, 0)),       # state block
                pl.BlockSpec((total_rows, lanes), lambda i: (0, 0)),    # weights: resident
            ],
            out_specs=pl.BlockSpec((block_b, lanes), lambda i: (i, 0)),  # lane-dense output
        ),
        compiler_params=pltpu.CompilerParams(
            dimension_semantics=("parallel",),   # shard batch blocks across TCs on v7x
        ),
        cost_estimate=pl.CostEstimate(
            flops=flops, transcendentals=0, bytes_accessed=bytes_accessed),
    )(x, slab)

    # Drop batch padding and lane padding (padding columns of w2/b2 are exactly zero).
    return out_padded[:B, :n_actions]


def init_params(key, input_dim, hidden, n_actions):
    """PyTorch nn.Linear-style uniform(-1/sqrt(fan_in), 1/sqrt(fan_in)) init.
    Weights are returned transposed to (in_features, out_features)."""
    k1, k2, k3, k4 = jax.random.split(key, 4)
    bound1 = 1.0 / jnp.sqrt(jnp.float32(input_dim))
    bound2 = 1.0 / jnp.sqrt(jnp.float32(hidden))
    w1 = jax.random.uniform(k1, (input_dim, hidden), jnp.float32, -bound1, bound1)
    b1 = jax.random.uniform(k2, (hidden,), jnp.float32, -bound1, bound1)
    w2 = jax.random.uniform(k3, (hidden, n_actions), jnp.float32, -bound2, bound2)
    b2 = jax.random.uniform(k4, (n_actions,), jnp.float32, -bound2, bound2)
    return w1, b1, w2, b2


if __name__ == "__main__":
    # CartPole-like sizes: input_dims=(4,), n_actions=2, hidden=128 (fixed by the module).
    B, D_IN, N_ACTIONS = 8, 4, 2

    key = jax.random.PRNGKey(0)
    k_x, k_p = jax.random.split(key)
    state = jax.random.normal(k_x, (B, D_IN), dtype=jnp.float32)
    w1, b1, w2, b2 = init_params(k_p, D_IN, HIDDEN, N_ACTIONS)

    # Pure-JAX reference (same math as the PyTorch forward).
    ref = jnp.maximum(state @ w1 + b1[None, :], 0.0) @ w2 + b2[None, :]

    # f32 path (exact check).
    slab_f32 = pack_params(w1, b1, w2, b2, dtype=jnp.float32)
    actions = linear_dqn_forward(state, slab_f32, n_actions=N_ACTIONS)
    jax.block_until_ready(actions)
    assert actions.shape == (B, N_ACTIONS)
    assert jnp.allclose(actions, ref, atol=1e-5, rtol=1e-5)

    # bf16 parameter/input path (bf16-native MXU), f32 accumulation; loose tolerance.
    slab_bf16 = pack_params(w1, b1, w2, b2, dtype=jnp.bfloat16)
    actions_bf16 = linear_dqn_forward(state, slab_bf16, n_actions=N_ACTIONS)
    jax.block_until_ready(actions_bf16)
    assert jnp.allclose(actions_bf16, ref, atol=5e-2, rtol=5e-2)

    # Larger batch exercises the multi-block grid path (grid > 1).
    B2 = 2048
    state2 = jax.random.normal(jax.random.PRNGKey(1), (B2, D_IN), dtype=jnp.float32)
    ref2 = jnp.maximum(state2 @ w1 + b1[None, :], 0.0) @ w2 + b2[None, :]
    actions2 = linear_dqn_forward(state2, slab_f32, n_actions=N_ACTIONS)
    jax.block_until_ready(actions2)
    assert jnp.allclose(actions2, ref2, atol=1e-4, rtol=1e-4)

    # TODO(synk): Adam optimizer, MSELoss and device placement are training infra, not forward math.
    print("KERNEL_OK")
</pallas_src>

<mosaic_0001>
module attributes {stable_mosaic.version = 11 : i64} {
  func.func @_mlp_kernel(%arg0: i32, %arg1: memref<8x8xf32, #tpu.memory_space<vmem>>, %arg2: memref<144x128xf32, #tpu.memory_space<vmem>>, %arg3: memref<8x128xf32, #tpu.memory_space<vmem>>) attributes {dimension_semantics = [#tpu.dimension_semantics<parallel>], iteration_bounds = array<i64: 1>, scalar_prefetch = 0 : i64, scratch_operands = 0 : i64, tpu.core_type = #tpu.core_type<tc>, window_params = [{transform_indices = @transform_0, window_bounds = array<i64: 8, 8>}, {pipeline_mode = #tpu.pipeline_mode<synchronous>, transform_indices = @transform_1, window_bounds = array<i64: 144, 128>}, {transform_indices = @transform_2, window_bounds = array<i64: 8, 128>}]} {
    %c0 = arith.constant 0 : index
    %c0_0 = arith.constant 0 : index
    %0 = vector.load %arg1[%c0, %c0_0] : memref<8x8xf32, #tpu.memory_space<vmem>>, vector<8x8xf32>
    %c0_1 = arith.constant 0 : index
    %c0_2 = arith.constant 0 : index
    %1 = vector.load %arg2[%c0_1, %c0_2] : memref<144x128xf32, #tpu.memory_space<vmem>>, vector<8x128xf32>
    %c8 = arith.constant 8 : index
    %c0_3 = arith.constant 0 : index
    %2 = vector.load %arg2[%c8, %c0_3] : memref<144x128xf32, #tpu.memory_space<vmem>>, vector<128x128xf32>
    %c136 = arith.constant 136 : index
    %c0_4 = arith.constant 0 : index
    %3 = vector.load %arg2[%c136, %c0_4] : memref<144x128xf32, #tpu.memory_space<vmem>>, vector<1x128xf32>
    %cst = arith.constant dense<0.000000e+00> : vector<8x128xf32>
    %4 = tpu.matmul %0, %1, %cst {dimension_numbers = #tpu.dot_dimension_numbers<[1], [0], [0], [1], [0, 0, 1, 1], [], []>} : vector<8x8xf32>, vector<8x128xf32>, vector<8x128xf32> -> vector<8x128xf32>
    %cst_5 = arith.constant 0.000000e+00 : f32
    %5 = vector.broadcast %cst_5 : f32 to vector<8x128xf32>
    %6 = arith.maximumf %4, %5 : vector<8x128xf32>
    %cst_6 = arith.constant dense<0.000000e+00> : vector<8x128xf32>
    %7 = tpu.matmul %6, %2, %cst_6 {dimension_numbers = #tpu.dot_dimension_numbers<[1], [0], [0], [1], [0, 0, 1, 1], [], []>} : vector<8x128xf32>, vector<128x128xf32>, vector<8x128xf32> -> vector<8x128xf32>
    %8 = vector.broadcast %3 : vector<1x128xf32> to vector<8x128xf32>
    %9 = arith.addf %7, %8 : vector<8x128xf32>
    %c0_7 = arith.constant 0 : index
    %c0_8 = arith.constant 0 : index
    %10 = vector.load %arg3[%c0_7, %c0_8] : memref<8x128xf32, #tpu.memory_space<vmem>>, vector<8x128xf32>
    tpu.vector_store %arg3[%c0_7, %c0_8], %9 {strides = array<i32>} : memref<8x128xf32, #tpu.memory_space<vmem>>, vector<8x128xf32>,
    return
  }
  func.func @transform_0(%arg0: i32) -> (i32, i32) {
    %c0_i32 = arith.constant 0 : i32
    %c0_i32_0 = arith.constant 0 : i32
    return %arg0, %c0_i32 : i32, i32
  }
  func.func @transform_1(%arg0: i32) -> (i32, i32) {
    %c0_i32 = arith.constant 0 : i32
    %c0_i32_0 = arith.constant 0 : i32
    %c0_i32_1 = arith.constant 0 : i32
    return %c0_i32, %c0_i32_0 : i32, i32
  }
  func.func @transform_2(%arg0: i32) -> (i32, i32) {
    %c0_i32 = arith.constant 0 : i32
    %c0_i32_0 = arith.constant 0 : i32
    return %arg0, %c0_i32 : i32, i32
  }
}

</mosaic_0001>

<llo_original>
// kernel: linear_dqn_forward.1
$region0: #{linear_dqn_forward.1}
  #allocation0 [shape = 'u32[]', space=smem, size = 0x4, offset = 0x4, fixed_abs, tag = 'smem constant byte address 0x4 - core index']
  #allocation1 [shape = 'u32[72,128]{1,0:T(1,128)}', space=vmem, size = 0x9000, scoped, tag = 'internal scratch']
  %s0 = inlined_call_operand.vmem [shape: f32[8,8], index: 0, kind: input, shape index: {}]
  %s1 = inlined_call_operand.hbm [shape: f32[144,128], index: 1, kind: input, shape index: {}]
  %s2 = inlined_call_operand.vmem [shape: f32[8,128], index: 2, kind: output, shape index: {}]
  %s3 = sld [smem:[#allocation0]]
  $region22: #{linear_dqn_forward.1} parent=0
    _
  %s5 = ssub.s32 1, %s3
  %s6 = scalar_select 0, %s5, %s3
  $region1: #{linear_dqn_forward.1} parent=0
    #allocation2 [shape = 'u8[73728]{0}', space=vmem, size = 0x12000, scoped, tag = 'input window, operand 1, single buffered']
    #allocation3 [shape = 's32[1]{0}', space=sflag, size = 0x4, scoped, tag = 'scoped memory for linear_dqn_forward.1']
    %7 = vsyncpa [#allocation3], 0
    // Predicated region
    $region2: #{linear_dqn_forward.1} parent=1 // pred_check
      _
    $region3: #{linear_dqn_forward.1} parent=1 // pred_check_branch
      %9 = sbr.rel (0) target = $region5
    $region4: #{linear_dqn_forward.1} parent=1 // pred_region
      _
    $region5: #{linear_dqn_forward.1} parent=1 // pred_fallthru
      _
    // Predicated region
    $region6: #{linear_dqn_forward.1} parent=1 // pred_check
      _
    $region7: #{linear_dqn_forward.1} parent=1 // pred_check_branch
      %11 = sbr.rel (0) target = $region9
    $region8: #{linear_dqn_forward.1} parent=1 // pred_region
      %13 = vsyncadd [#allocation3], 0
      %s14 = sshll.u32 %s1, 4
      %s15 = int_to_ptr.hbm [resolvable:$true] %s14
      %s16 = sshll.u32 [#allocation2], 4
      %s17 = int_to_ptr.vmem [resolvable:$true] %s16
      %22 = dma.hbm_to_vmem [thread:$0]  %s15, 2304, %s17, [#allocation3], 128, 128, 8
    $region9: #{linear_dqn_forward.1} parent=1 // pred_fallthru
      _
    // Predicated region
    $region10: #{linear_dqn_forward.1} parent=1 // pred_check
      _
    $region11: #{linear_dqn_forward.1} parent=1 // pred_check_branch
      %24 = sbr.rel (0) target = $region13
    $region12: #{linear_dqn_forward.1} parent=1 // pred_region
      %26 = dma.done [#allocation3], 2304
    $region13: #{linear_dqn_forward.1} parent=1 // pred_fallthru
      _
    %v27 = vld [vmem:[%s0] sm:$0xff]
    %v28 = vld [vmem:[#allocation2] sm:$0xff]
    %v29 = vld [vmem:[#allocation2 + $0x8] sm:$0xff]
    %v30 = vld [vmem:[#allocation2 + $0x10] sm:$0xff]
    %v31 = vld [vmem:[#allocation2 + $0x18] sm:$0xff]
    %v32 = vld [vmem:[#allocation2 + $0x20] sm:$0xff]
    %v33 = vld [vmem:[#allocation2 + $0x28] sm:$0xff]
    %v34 = vld [vmem:[#allocation2 + $0x30] sm:$0xff]
    %v35 = vld [vmem:[#allocation2 + $0x38] sm:$0xff]
    %v36 = vld [vmem:[#allocation2 + $0x40] sm:$0xff]
    %v37 = vld [vmem:[#allocation2 + $0x48] sm:$0xff]
    %v38 = vld [vmem:[#allocation2 + $0x50] sm:$0xff]
    %v39 = vld [vmem:[#allocation2 + $0x58] sm:$0xff]
    %v40 = vld [vmem:[#allocation2 + $0x60] sm:$0xff]
    %v41 = vld [vmem:[#allocation2 + $0x68] sm:$0xff]
    %v42 = vld [vmem:[#allocation2 + $0x70] sm:$0xff]
    %v43 = vld [vmem:[#allocation2 + $0x78] sm:$0xff]
    %v44 = vld [vmem:[#allocation2 + $0x80] sm:$0xff]
    %v45 = vld [vmem:[#allocation2 + $0x88] sm:$0x1]
    %vm46 = vcmask 64512
    %v48 = vsel %vm46, %v27, 0
    %50 = vmatpush.msra.mxu0 0.0
    %51 = vmatpush.msra.mxu0 0.0
    %52 = vmatpush.msra.mxu0 0.0
    %53 = vmatpush.msra.mxu0 0.0
    %54 = vmatpush.msra.mxu0 0.0
    %55 = vmatpush.msra.mxu0 0.0
    %56 = vmatpush.msra.mxu0 0.0
    %57 = vmatpush.msra.mxu0 0.0
    %58 = vmatpush.msra.mxu0 0.0
    %59 = vmatpush.msra.mxu0 0.0
    %60 = vmatpush.msra.mxu0 0.0
    %61 = vmatpush.msra.mxu0 0.0
    %62 = vmatpush.msra.mxu0 0.0
    %63 = vmatpush.msra.mxu0 0.0
    %64 = vmatpush.msra.mxu0 0.0
    %65 = vmatpush.msra.mxu0 %v28
    %66 = vmatmul.f32.gmra.mxu0 %v48
    %v67 = vpop.f32.mrf.mxu0
    %v68 = vadd.f32 0.0, %v67
    %69 = vdwg.mxu0
    %v70 = vmax.f32 %v68, 0.0
    %v71 = vperm.slane %v45, 0
    %72 = vmatpush.msra.mxu0 %v44
    %73 = vmatpush.msra.mxu0 %v43
    %74 = vmatpush.msra.mxu0 %v42
    %75 = vmatpush.msra.mxu0 %v41
    %76 = vmatpush.msra.mxu0 %v40
    %77 = vmatpush.msra.mxu0 %v39
    %78 = vmatpush.msra.mxu0 %v38
    %79 = vmatpush.msra.mxu0 %v37
    %80 = vmatpush.msra.mxu0 %v36
    %81 = vmatpush.msra.mxu0 %v35
    %82 = vmatpush.msra.mxu0 %v34
    %83 = vmatpush.msra.mxu0 %v33
    %84 = vmatpush.msra.mxu0 %v32
    %85 = vmatpush.msra.mxu0 %v31
    %86 = vmatpush.msra.mxu0 %v30
    %87 = vmatpush.msra.mxu0 %v29
    %88 = vmatmul.f32.gmra.mxu0 %v70
    %v89 = vpop.f32.mrf.mxu0
    %v90 = vadd.f32 %v71, %v89
    %91 = vdwg.mxu0
    %92 = vst [vmem:[%s2] sm:$0xff] %v90
    // Predicated region
    $region14: #{linear_dqn_forward.1} parent=1 // pred_check
      _
    $region15: #{linear_dqn_forward.1} parent=1 // pred_check_branch
      %94 = sbr.rel (0) target = $region17
    $region16: #{linear_dqn_forward.1} parent=1 // pred_region
      _
    $region17: #{linear_dqn_forward.1} parent=1 // pred_fallthru
      _
    // Predicated region
    $region18: #{linear_dqn_forward.1} parent=1 // pred_check
      _
    $region19: #{linear_dqn_forward.1} parent=1 // pred_check_branch
      %96 = sbr.rel (0) target = $region21
    $region20: #{linear_dqn_forward.1} parent=1 // pred_region
      _
    $region21: #{linear_dqn_forward.1} parent=1 // pred_fallthru
      _
    %97 = vsyncpa [#allocation3], 1

</llo_original>
